<compile_context>
chip_gen: v7x
topology: tpu7x:2x2x1
jax: 0.10.0
libtpu: 0.0.40
codegen_flags: <defaults>
</compile_context>

<pallas_src>
import jax
import jax.numpy as jnp
from jax.experimental import pallas as pl
from jax.experimental.pallas import tpu as pltpu


def _clip_mse_pos_pair_kernel(labels_ref, x_ref, t_ref, mask_ref, out_ref):
    x = x_ref[...]            # (B, S, C) f32
    t = t_ref[...]            # (B, S, C) f32
    mask = mask_ref[...]      # (C, S)    f32
    labels = labels_ref[...]  # (B, 1)    int32

    B, S, C = x.shape

    # Squared error over the full (B, S, C) tile (lane-dense, pure VPU).
    diff = x - t
    diff2 = diff * diff                                            # (B, S, C)

    # One-hot over the label axis: onehot[b, c] = (c == labels[b]).
    c_iota = jax.lax.broadcasted_iota(jnp.int32, (B, C), 1)        # (B, C)
    onehot = (c_iota == labels).astype(jnp.float32)                # (B, C)

    # m_b[b] = number of positive entries in mask[labels[b]].
    pos = (mask > 0).astype(jnp.float32)                           # (C, S)
    per_label = jnp.sum(onehot[:, :, None] * pos[None, :, :],
                        axis=2)                                    # (B, C) lane reduce
    m_b = jnp.sum(per_label, axis=1, keepdims=True)                # (B, 1) lane reduce

    # Select the label column of the squared error: sel[b, s] = diff2[b, s, labels[b]].
    sel = jnp.sum(diff2 * onehot[:, None, :], axis=2)              # (B, S) lane reduce

    # Row mask (s < m) replaces the data-dependent :m slice.
    s_iota = jax.lax.broadcasted_iota(jnp.int32, (B, S), 1).astype(jnp.float32)
    rowmask = (s_iota < m_b).astype(jnp.float32)                   # (B, S)

    per_batch = jnp.sum(sel * rowmask, axis=1, keepdims=True)      # (B, 1)
    loss = jnp.sum(per_batch / m_b, axis=0, keepdims=True)         # (1, 1)

    # Single dense store of the final scalar.
    out_ref[...] = loss


def clip_mse_pos_pair(x, target, mask, query_labels):
    """x, target: (B, S, C); mask: (C, S); query_labels: (B,) int -> scalar loss."""
    B, S, C = x.shape
    labels_2d = jnp.asarray(query_labels, dtype=jnp.int32).reshape(B, 1)

    out = pl.pallas_call(
        _clip_mse_pos_pair_kernel,
        out_shape=jax.ShapeDtypeStruct((1, 1), jnp.float32),
        in_specs=[
            pl.BlockSpec(memory_space=pltpu.MemorySpace.VMEM),   # query_labels (B, 1)
            pl.BlockSpec(memory_space=pltpu.MemorySpace.VMEM),   # x            (B, S, C)
            pl.BlockSpec(memory_space=pltpu.MemorySpace.VMEM),   # target       (B, S, C)
            pl.BlockSpec(memory_space=pltpu.MemorySpace.VMEM),   # mask         (C, S)
        ],
        out_specs=pl.BlockSpec(memory_space=pltpu.MemorySpace.VMEM),
    )(labels_2d,
      x.astype(jnp.float32),
      target.astype(jnp.float32),
      mask.astype(jnp.float32))

    return out[0, 0]


def _reference(x, target, mask, query_labels):
    """Plain-JAX mirror of the PyTorch forward (runs eagerly on concrete arrays)."""
    loss = 0.0
    for idx in range(query_labels.shape[0]):
        label = int(query_labels[idx])
        m = int(jnp.sum(mask[label] > 0))
        p = x[idx, :m, label]
        q = target[idx, :m, label]
        loss = loss + jnp.sum((p - q) ** 2) / m
    return jnp.asarray(loss, dtype=jnp.float32)


if __name__ == "__main__":
    # Small shapes consistent with the module: batch=4, seq=16, num_labels=8.
    B, S, C = 4, 16, 8

    key = jax.random.PRNGKey(0)
    kx, kt, km, kl = jax.random.split(key, 4)

    x = jax.random.normal(kx, (B, S, C), dtype=jnp.float32)
    target = jax.random.normal(kt, (B, S, C), dtype=jnp.float32)

    # Binary mask per label; guarantee every label row has at least one positive
    # so m > 0 (same requirement as the PyTorch original).
    mask = (jax.random.uniform(km, (C, S)) > 0.4).astype(jnp.float32)
    mask = mask.at[:, 0].set(1.0)

    query_labels = jax.random.randint(kl, (B,), 0, C, dtype=jnp.int32)

    loss = clip_mse_pos_pair(x, target, mask, query_labels)
    loss = jax.block_until_ready(loss)

    ref = _reference(x, target, mask, query_labels)
    assert loss.shape == (), f"expected scalar, got shape {loss.shape}"
    assert jnp.allclose(loss, ref, atol=1e-4, rtol=1e-4), (
        f"mismatch vs reference: kernel={float(loss)} ref={float(ref)}")

    print("KERNEL_OK")
</pallas_src>

<mosaic_0001>
module attributes {stable_mosaic.version = 11 : i64} {
  func.func @_clip_mse_pos_pair_kernel(%arg0: memref<4x1xi32, #tpu.memory_space<vmem>>, %arg1: memref<4x16x8xf32, #tpu.memory_space<vmem>>, %arg2: memref<4x16x8xf32, #tpu.memory_space<vmem>>, %arg3: memref<8x16xf32, #tpu.memory_space<vmem>>, %arg4: memref<1x1xf32, #tpu.memory_space<vmem>>) attributes {dimension_semantics = [], scalar_prefetch = 0 : i64, scratch_operands = 0 : i64, tpu.core_type = #tpu.core_type<tc>} {
    %c0 = arith.constant 0 : index
    %c0_0 = arith.constant 0 : index
    %c0_1 = arith.constant 0 : index
    %0 = vector.load %arg1[%c0, %c0_0, %c0_1] : memref<4x16x8xf32, #tpu.memory_space<vmem>>, vector<4x16x8xf32>
    %c0_2 = arith.constant 0 : index
    %c0_3 = arith.constant 0 : index
    %c0_4 = arith.constant 0 : index
    %1 = vector.load %arg2[%c0_2, %c0_3, %c0_4] : memref<4x16x8xf32, #tpu.memory_space<vmem>>, vector<4x16x8xf32>
    %c0_5 = arith.constant 0 : index
    %c0_6 = arith.constant 0 : index
    %2 = vector.load %arg3[%c0_5, %c0_6] : memref<8x16xf32, #tpu.memory_space<vmem>>, vector<8x16xf32>
    %c0_7 = arith.constant 0 : index
    %c0_8 = arith.constant 0 : index
    %3 = vector.load %arg0[%c0_7, %c0_8] : memref<4x1xi32, #tpu.memory_space<vmem>>, vector<4x1xi32>
    %4 = arith.subf %0, %1 : vector<4x16x8xf32>
    %5 = arith.mulf %4, %4 : vector<4x16x8xf32>
    %6 = tpu.iota {dimensions = array<i32: 1>} : vector<4x8xi32>
    %7 = vector.broadcast %3 : vector<4x1xi32> to vector<4x8xi32>
    %8 = arith.cmpi eq, %6, %7 : vector<4x8xi32>
    %9 = arith.extui %8 : vector<4x8xi1> to vector<4x8xi32>
    %10 = arith.sitofp %9 : vector<4x8xi32> to vector<4x8xf32>
    %cst = arith.constant 0.000000e+00 : f32
    %11 = vector.broadcast %cst : f32 to vector<8x16xf32>
    %12 = arith.cmpf ogt, %2, %11 : vector<8x16xf32>
    %13 = arith.extui %12 : vector<8x16xi1> to vector<8x16xi32>
    %14 = arith.sitofp %13 : vector<8x16xi32> to vector<8x16xf32>
    %15 = vector.shape_cast %10 : vector<4x8xf32> to vector<4x8x1xf32>
    %16 = vector.shape_cast %14 : vector<8x16xf32> to vector<1x8x16xf32>
    %17 = vector.broadcast %15 : vector<4x8x1xf32> to vector<4x8x16xf32>
    %18 = vector.broadcast %16 : vector<1x8x16xf32> to vector<4x8x16xf32>
    %19 = arith.mulf %17, %18 : vector<4x8x16xf32>
    %cst_9 = arith.constant dense<0.000000e+00> : vector<4x8xf32>
    %20 = vector.multi_reduction <add>, %19, %cst_9 [2] : vector<4x8x16xf32> to vector<4x8xf32>
    %cst_10 = arith.constant dense<0.000000e+00> : vector<4xf32>
    %21 = vector.multi_reduction <add>, %20, %cst_10 [1] : vector<4x8xf32> to vector<4xf32>
    %22 = vector.shape_cast %21 : vector<4xf32> to vector<4x1xf32>
    %23 = vector.shape_cast %10 : vector<4x8xf32> to vector<4x1x8xf32>
    %24 = vector.broadcast %23 : vector<4x1x8xf32> to vector<4x16x8xf32>
    %25 = arith.mulf %5, %24 : vector<4x16x8xf32>
    %cst_11 = arith.constant dense<0.000000e+00> : vector<4x16xf32>
    %26 = vector.multi_reduction <add>, %25, %cst_11 [2] : vector<4x16x8xf32> to vector<4x16xf32>
    %27 = tpu.iota {dimensions = array<i32: 1>} : vector<4x16xi32>
    %28 = arith.sitofp %27 : vector<4x16xi32> to vector<4x16xf32>
    %29 = vector.broadcast %22 : vector<4x1xf32> to vector<4x16xf32>
    %30 = arith.cmpf olt, %28, %29 : vector<4x16xf32>
    %31 = arith.extui %30 : vector<4x16xi1> to vector<4x16xi32>
    %32 = arith.sitofp %31 : vector<4x16xi32> to vector<4x16xf32>
    %33 = arith.mulf %26, %32 : vector<4x16xf32>
    %cst_12 = arith.constant dense<0.000000e+00> : vector<4xf32>
    %34 = vector.multi_reduction <add>, %33, %cst_12 [1] : vector<4x16xf32> to vector<4xf32>
    %35 = vector.shape_cast %34 : vector<4xf32> to vector<4x1xf32>
    %36 = arith.divf %35, %22 : vector<4x1xf32>
    %cst_13 = arith.constant dense<0.000000e+00> : vector<1xf32>
    %37 = vector.multi_reduction <add>, %36, %cst_13 [0] : vector<4x1xf32> to vector<1xf32>
    %38 = vector.shape_cast %37 : vector<1xf32> to vector<1x1xf32>
    %c0_14 = arith.constant 0 : index
    %c0_15 = arith.constant 0 : index
    %39 = vector.load %arg4[%c0_14, %c0_15] : memref<1x1xf32, #tpu.memory_space<vmem>>, vector<1x1xf32>
    tpu.vector_store %arg4[%c0_14, %c0_15], %38 {strides = array<i32>} : memref<1x1xf32, #tpu.memory_space<vmem>>, vector<1x1xf32>,
    return
  }
}

</mosaic_0001>

<llo_original>
// kernel: tpu_custom_call.1
$region0: #{tpu_custom_call.1}
  #allocation0 [shape = 'u32[]', space=smem, size = 0x4, offset = 0x4, fixed_abs, tag = 'smem constant byte address 0x4 - core index']
  #allocation1 [shape = 'u32[144,128]{1,0:T(1,128)}', space=vmem, size = 0x12000, scoped, tag = 'internal scratch']
  %s0 = inlined_call_operand.vmem [shape: s32[4,1], index: 0, kind: input, shape index: {}]
  %s1 = inlined_call_operand.vmem [shape: f32[4,16,8], index: 1, kind: input, shape index: {}]
  %s2 = inlined_call_operand.vmem [shape: f32[4,16,8], index: 2, kind: input, shape index: {}]
  %s3 = inlined_call_operand.vmem [shape: f32[8,16], index: 3, kind: input, shape index: {}]
  %s4 = inlined_call_operand.hbm [shape: f32[1,1], index: 4, kind: output, shape index: {}]
  %s5 = sld [smem:[#allocation0]]
  $region26: #{tpu_custom_call.1} parent=0
    _
  %s7 = ssub.s32 1, %s5
  %s8 = scalar_select 0, %s7, %s5
  $region1: #{tpu_custom_call.1} parent=0
    #allocation2 [shape = 'u8[512]{0}', space=vmem, size = 0x400, scoped, tag = 'output window, operand 0, single buffered']
    #allocation3 [shape = 's32[1]{0}', space=sflag, size = 0x4, scoped, tag = 'scoped memory for tpu_custom_call.1']
    %9 = vsyncpa [#allocation3], 0
    // Predicated region
    $region2: #{tpu_custom_call.1} parent=1 // pred_check
      _
    $region3: #{tpu_custom_call.1} parent=1 // pred_check_branch
      %11 = sbr.rel (0) target = $region5
    $region4: #{tpu_custom_call.1} parent=1 // pred_region
      _
    $region5: #{tpu_custom_call.1} parent=1 // pred_fallthru
      _
    // Predicated region
    $region6: #{tpu_custom_call.1} parent=1 // pred_check
      _
    $region7: #{tpu_custom_call.1} parent=1 // pred_check_branch
      %13 = sbr.rel (0) target = $region9
    $region8: #{tpu_custom_call.1} parent=1 // pred_region
      _
    $region9: #{tpu_custom_call.1} parent=1 // pred_fallthru
      _
    // Predicated region
    $region10: #{tpu_custom_call.1} parent=1 // pred_check
      _
    $region11: #{tpu_custom_call.1} parent=1 // pred_check_branch
      %15 = sbr.rel (0) target = $region13
    $region12: #{tpu_custom_call.1} parent=1 // pred_region
      _
    $region13: #{tpu_custom_call.1} parent=1 // pred_fallthru
      _
    // Predicated region
    $region14: #{tpu_custom_call.1} parent=1 // pred_check
      _
    $region15: #{tpu_custom_call.1} parent=1 // pred_check_branch
      %17 = sbr.rel (0) target = $region17
    $region16: #{tpu_custom_call.1} parent=1 // pred_region
      _
    $region17: #{tpu_custom_call.1} parent=1 // pred_fallthru
      _
    %v18 = vld [vmem:[%s1] sm:$0xff]
    %v19 = vld [vmem:[%s1 + $0x8] sm:$0xff]
    %v20 = vld [vmem:[%s1 + $0x10] sm:$0xff]
    %v21 = vld [vmem:[%s1 + $0x18] sm:$0xff]
    %v22 = vld [vmem:[%s1 + $0x20] sm:$0xff]
    %v23 = vld [vmem:[%s1 + $0x28] sm:$0xff]
    %v24 = vld [vmem:[%s1 + $0x30] sm:$0xff]
    %v25 = vld [vmem:[%s1 + $0x38] sm:$0xff]
    %v26 = vld [vmem:[%s2] sm:$0xff]
    %v27 = vld [vmem:[%s2 + $0x8] sm:$0xff]
    %v28 = vld [vmem:[%s2 + $0x10] sm:$0xff]
    %v29 = vld [vmem:[%s2 + $0x18] sm:$0xff]
    %v30 = vld [vmem:[%s2 + $0x20] sm:$0xff]
    %v31 = vld [vmem:[%s2 + $0x28] sm:$0xff]
    %v32 = vld [vmem:[%s2 + $0x30] sm:$0xff]
    %v33 = vld [vmem:[%s2 + $0x38] sm:$0xff]
    %v34 = vld [vmem:[%s3] sm:$0xff]
    %v35 = vld [vmem:[%s0] sm:$0xf]
    %v36 = vsub.f32 %v18, %v26
    %v37 = vsub.f32 %v19, %v27
    %v38 = vsub.f32 %v20, %v28
    %v39 = vsub.f32 %v21, %v29
    %v40 = vsub.f32 %v22, %v30
    %v41 = vsub.f32 %v23, %v31
    %v42 = vsub.f32 %v24, %v32
    %v43 = vsub.f32 %v25, %v33
    %v44 = vmul.f32 %v36, %v36
    %v45 = vmul.f32 %v37, %v37
    %v46 = vmul.f32 %v38, %v38
    %v47 = vmul.f32 %v39, %v39
    %v48 = vmul.f32 %v40, %v40
    %v49 = vmul.f32 %v41, %v41
    %v50 = vmul.f32 %v42, %v42
    %v51 = vmul.f32 %v43, %v43
    %v52 = vlaneseq
    %v53 = vand.u32 %v52, 127
    %54 = vset.pattern.permute.xlu0 0
    %55 = vperm.xlu0 %54, %v35
    %v56 = vpop.permute.xlu0 %55
    %vm57 = vcmp.eq.s32.totalorder %v53, %v56
    %v58 = vsel %vm57, 1, 0
    %v59 = vcvt.s32.f32 %v58
    %vm60 = vcmp.gt.f32.partialorder %v34, 0.0
    %v61 = vsel %vm60, 1, 0
    %v62 = vcvt.s32.f32 %v61
    %v63 = vlaneseq
    %v64 = vshrl.u32 %v63, 7
    %v65 = vsub.s32 0, %v64
    %v66 = vrot.slane %v59, %v65
    %68 = vbcast.lane.b32.xlu0 %v66, 256
    %v69 = vpop.permute.xlu0 %68
    %v70 = vlaneseq
    %v71 = vshrl.u32 %v70, 7
    %v72 = vsub.s32 1, %v71
    %v73 = vrot.slane %v59, %v72
    %75 = vbcast.lane.b32.xlu0 %v73, 256
    %v76 = vpop.permute.xlu0 %75
    %v77 = vlaneseq
    %v78 = vshrl.u32 %v77, 7
    %v79 = vsub.s32 2, %v78
    %v80 = vrot.slane %v59, %v79
    %82 = vbcast.lane.b32.xlu0 %v80, 256
    %v83 = vpop.permute.xlu0 %82
    %v84 = vlaneseq
    %v85 = vshrl.u32 %v84, 7
    %v86 = vsub.s32 3, %v85
    %v87 = vrot.slane %v59, %v86
    %89 = vbcast.lane.b32.xlu0 %v87, 256
    %v90 = vpop.permute.xlu0 %89
    %v91 = vmul.f32 %v69, %v62
    %v92 = vmul.f32 %v76, %v62
    %v93 = vmul.f32 %v83, %v62
    %v94 = vmul.f32 %v90, %v62
    %vm95 = vcmask 130048
    %v96 = vsel %vm95, %v91, 0.0
    %97 = vadd.xlane.f32.xlu0 %v96
    %v98 = vpop.xlane.xlu0 %97
    %v99 = vsel %vm95, %v92, 0.0
    %100 = vadd.xlane.f32.xlu0 %v99
    %v101 = vpop.xlane.xlu0 %100
    %v102 = vsel %vm95, %v93, 0.0
    %103 = vadd.xlane.f32.xlu0 %v102
    %v104 = vpop.xlane.xlu0 %103
    %v105 = vsel %vm95, %v94, 0.0
    %106 = vadd.xlane.f32.xlu0 %v105
    %v107 = vpop.xlane.xlu0 %106
    %v112 = vlaneseq
    %v113 = vshrl.u32 %v112, 7
    %v114 = vsub.s32 %v53, %v113
    %v115 = vrot.slane %v98, %v114
    %v116 = vlaneseq
    %v117 = vshrl.u32 %v116, 7
    %v118 = vsub.s32 %v53, %v117
    %v119 = vrot.slane %v101, %v118
    %v120 = vlaneseq
    %v121 = vshrl.u32 %v120, 7
    %v122 = vsub.s32 %v53, %v121
    %v123 = vrot.slane %v104, %v122
    %v124 = vlaneseq
    %v125 = vshrl.u32 %v124, 7
    %v126 = vsub.s32 %v53, %v125
    %v127 = vrot.slane %v107, %v126
    %vm128 = vcmask 1041409
    %v129 = vsel %vm128, %v119, %v115
    %vm130 = vcmask 1042434
    %v131 = vsel %vm130, %v123, %v129
    %vm132 = vcmask 1043459
    %v133 = vsel %vm132, %v127, %v131
    %vm135 = vcmask 60416
    %v136 = vsel %vm135, %v133, 0.0
    %137 = vadd.xlane.f32.xlu0 %v136
    %v138 = vpop.xlane.xlu0 %137
    %v141 = vunpack.c.l.s4 1966171168
    %v142 = vunpack.c.0.s8 %v141
    %v143 = vlaneseq
    %v144 = vshrl.u32 %v143, 7
    %v145 = vsub.s32 %v142, %v144
    %v146 = vrot.slane %v59, %v145
    %v147 = vcombine.high %v146, %v146
    %v149 = vunpack.c.l.s4 1966171168
    %v150 = vunpack.c.0.s8 %v149
    %v151 = vlaneseq
    %v152 = vshrl.u32 %v151, 7
    %v153 = vsub.s32 %v150, %v152
    %v154 = vrot.slane %v146, %v153
    %v156 = vunpack.c.l.s4 1966171168
    %v157 = vunpack.c.0.s8 %v156
    %v158 = vlaneseq
    %v159 = vshrl.u32 %v158, 7
    %v160 = vsub.s32 %v157, %v159
    %v161 = vrot.slane %v147, %v160
    %v162 = vcombine.high %v154, %v154
    %v163 = vcombine.high %v161, %v161
    %v164 = vlaneseq
    %v165 = vshrl.u32 %v164, 7
    %v166 = vsub.s32 0, %v165
    %v167 = vrot.slane %v154, %v166
    %v168 = vlaneseq
    %v169 = vshrl.u32 %v168, 7
    %v170 = vsub.s32 0, %v169
    %v171 = vrot.slane %v161, %v170
    %v172 = vlaneseq
    %v173 = vshrl.u32 %v172, 7
    %v174 = vsub.s32 0, %v173
    %v175 = vrot.slane %v162, %v174
    %v176 = vlaneseq
    %v177 = vshrl.u32 %v176, 7
    %v178 = vsub.s32 0, %v177
    %v179 = vrot.slane %v163, %v178
    %v184 = vmul.f32 %v44, %v167
    %v185 = vmul.f32 %v45, %v167
    %v186 = vmul.f32 %v46, %v171
    %v187 = vmul.f32 %v47, %v171
    %v188 = vmul.f32 %v48, %v175
    %v189 = vmul.f32 %v49, %v175
    %v190 = vmul.f32 %v50, %v179
    %v191 = vmul.f32 %v51, %v179
    %vm192 = vcmask 64512
    %v193 = vsel %vm192, %v184, 0.0
    %194 = vadd.xlane.f32.xlu0 %v193
    %v195 = vpop.xlane.xlu0 %194
    %v196 = vsel %vm192, %v185, 0.0
    %197 = vadd.xlane.f32.xlu0 %v196
    %v198 = vpop.xlane.xlu0 %197
    %v199 = vsel %vm192, %v186, 0.0
    %200 = vadd.xlane.f32.xlu0 %v199
    %v201 = vpop.xlane.xlu0 %200
    %v202 = vsel %vm192, %v187, 0.0
    %203 = vadd.xlane.f32.xlu0 %v202
    %v204 = vpop.xlane.xlu0 %203
    %v205 = vsel %vm192, %v188, 0.0
    %206 = vadd.xlane.f32.xlu0 %v205
    %v207 = vpop.xlane.xlu0 %206
    %v208 = vsel %vm192, %v189, 0.0
    %209 = vadd.xlane.f32.xlu0 %v208
    %v210 = vpop.xlane.xlu0 %209
    %v211 = vsel %vm192, %v190, 0.0
    %212 = vadd.xlane.f32.xlu0 %v211
    %v213 = vpop.xlane.xlu0 %212
    %v214 = vsel %vm192, %v191, 0.0
    %215 = vadd.xlane.f32.xlu0 %v214
    %v216 = vpop.xlane.xlu0 %215
    %v217 = vcvt.s32.f32 %v53
    %vm218 = vcmp.lt.f32.partialorder %v217, %v138
    %v219 = vsel %vm218, 1, 0
    %v220 = vcvt.s32.f32 %v219
    %v222 = vlaneseq
    %v223 = vshrl.u32 %v222, 7
    %v224 = vsub.s32 0, %v223
    %v225 = vrot.slane %v220, %v224
    %227 = vbcast.lane.b32.xlu0 %v225, 256
    %v228 = vpop.permute.xlu0 %227
    %s230 = sor.u32 256, 8
    %231 = vbcast.lane.b32.xlu0 %v225, %s230
    %v232 = vpop.permute.xlu0 %231
    %v233 = vlaneseq
    %v234 = vshrl.u32 %v233, 7
    %v235 = vsub.s32 1, %v234
    %v236 = vrot.slane %v220, %v235
    %238 = vbcast.lane.b32.xlu0 %v236, 256
    %v239 = vpop.permute.xlu0 %238
    %s241 = sor.u32 256, 8
    %242 = vbcast.lane.b32.xlu0 %v236, %s241
    %v243 = vpop.permute.xlu0 %242
    %v244 = vlaneseq
    %v245 = vshrl.u32 %v244, 7
    %v246 = vsub.s32 2, %v245
    %v247 = vrot.slane %v220, %v246
    %249 = vbcast.lane.b32.xlu0 %v247, 256
    %v250 = vpop.permute.xlu0 %249
    %s252 = sor.u32 256, 8
    %253 = vbcast.lane.b32.xlu0 %v247, %s252
    %v254 = vpop.permute.xlu0 %253
    %v255 = vlaneseq
    %v256 = vshrl.u32 %v255, 7
    %v257 = vsub.s32 3, %v256
    %v258 = vrot.slane %v220, %v257
    %260 = vbcast.lane.b32.xlu0 %v258, 256
    %v261 = vpop.permute.xlu0 %260
    %s263 = sor.u32 256, 8
    %264 = vbcast.lane.b32.xlu0 %v258, %s263
    %v265 = vpop.permute.xlu0 %264
    %v274 = vmul.f32 %v195, %v228
    %v275 = vmul.f32 %v198, %v232
    %v276 = vmul.f32 %v201, %v239
    %v277 = vmul.f32 %v204, %v243
    %v278 = vmul.f32 %v207, %v250
    %v279 = vmul.f32 %v210, %v254
    %v280 = vmul.f32 %v213, %v261
    %v281 = vmul.f32 %v216, %v265
    %290 = vset.pattern.permute.xlu0 0
    %291 = vperm.xlu0 %290, %v274
    %v292 = vpop.permute.xlu0 %291
    %293 = vset.pattern.permute.xlu0 0
    %294 = vperm.xlu0 %293, %v275
    %v295 = vpop.permute.xlu0 %294
    %296 = vset.pattern.permute.xlu0 0
    %297 = vperm.xlu0 %296, %v276
    %v298 = vpop.permute.xlu0 %297
    %299 = vset.pattern.permute.xlu0 0
    %300 = vperm.xlu0 %299, %v277
    %v301 = vpop.permute.xlu0 %300
    %302 = vset.pattern.permute.xlu0 0
    %303 = vperm.xlu0 %302, %v278
    %v304 = vpop.permute.xlu0 %303
    %305 = vset.pattern.permute.xlu0 0
    %306 = vperm.xlu0 %305, %v279
    %v307 = vpop.permute.xlu0 %306
    %308 = vset.pattern.permute.xlu0 0
    %309 = vperm.xlu0 %308, %v280
    %v310 = vpop.permute.xlu0 %309
    %311 = vset.pattern.permute.xlu0 0
    %312 = vperm.xlu0 %311, %v281
    %v313 = vpop.permute.xlu0 %312
    %v314 = vlaneseq
    %v315 = vshrl.u32 %v314, 7
    %v316 = vsub.s32 %v53, %v315
    %v317 = vrot.slane %v292, %v316
    %v318 = vadd.s32 %v53, 4294967288
    %v319 = vlaneseq
    %v320 = vshrl.u32 %v319, 7
    %v321 = vsub.s32 %v318, %v320
    %v322 = vrot.slane %v295, %v321
    %vm323 = vcmask 130112
    %v324 = vsel %vm323, %v322, %v317
    %v325 = vlaneseq
    %v326 = vshrl.u32 %v325, 7
    %v327 = vsub.s32 %v53, %v326
    %v328 = vrot.slane %v298, %v327
    %v329 = vlaneseq
    %v330 = vshrl.u32 %v329, 7
    %v331 = vsub.s32 %v318, %v330
    %v332 = vrot.slane %v301, %v331
    %v333 = vsel %vm323, %v332, %v328
    %v334 = vlaneseq
    %v335 = vshrl.u32 %v334, 7
    %v336 = vsub.s32 %v53, %v335
    %v337 = vrot.slane %v304, %v336
    %v338 = vlaneseq
    %v339 = vshrl.u32 %v338, 7
    %v340 = vsub.s32 %v318, %v339
    %v341 = vrot.slane %v307, %v340
    %v342 = vsel %vm323, %v341, %v337
    %v343 = vlaneseq
    %v344 = vshrl.u32 %v343, 7
    %v345 = vsub.s32 %v53, %v344
    %v346 = vrot.slane %v310, %v345
    %v347 = vlaneseq
    %v348 = vshrl.u32 %v347, 7
    %v349 = vsub.s32 %v318, %v348
    %v350 = vrot.slane %v313, %v349
    %v351 = vsel %vm323, %v350, %v346
    %v352 = vsel %vm128, %v333, %v324
    %v353 = vsel %vm130, %v342, %v352
    %v354 = vsel %vm132, %v351, %v353
    %vm356 = vcmask 125952
    %v357 = vsel %vm356, %v354, 0.0
    %358 = vadd.xlane.f32.xlu0 %v357
    %v359 = vpop.xlane.xlu0 %358
    %v360 = vrcp.pop %v138
    %v361 = vmul.f32 %v359, %v360
    %vm362 = vcmask 1043456
    %v363 = vsel %vm362, %v361, 0.0
    %v364 = vrot.slane %v363, 4
    %v365 = vadd.f32 %v363, %v364
    %v366 = vrot.slane %v365, 2
    %v367 = vadd.f32 %v365, %v366
    %v368 = vrot.slane %v367, 1
    %v369 = vadd.f32 %v367, %v368
    %vm370 = vcmask 0
    %371 = vst.msk [vmem:[#allocation2] sm:$0x1] %vm370, %v369
    // Predicated region
    $region18: #{tpu_custom_call.1} parent=1 // pred_check
      _
    $region19: #{tpu_custom_call.1} parent=1 // pred_check_branch
      %373 = sbr.rel (0) target = $region21
    $region20: #{tpu_custom_call.1} parent=1 // pred_region
      %s375 = ssub.s32 16, 16
      %376 = vsyncadd [#allocation3], %s375
      %s378 = sshll.u32 [#allocation2], 4
      %s379 = int_to_ptr.vmem [resolvable:$true] %s378
      %381 = dma.vmem_to_hbm [thread:$0]  %s379, 16, %s4, [#allocation3]
    $region21: #{tpu_custom_call.1} parent=1 // pred_fallthru
      _
    // Predicated region
    $region22: #{tpu_custom_call.1} parent=1 // pred_check
      _
    $region23: #{tpu_custom_call.1} parent=1 // pred_check_branch
      %383 = sbr.rel (0) target = $region25
    $region24: #{tpu_custom_call.1} parent=1 // pred_region
      %384 = dma.done [#allocation3], 16
    $region25: #{tpu_custom_call.1} parent=1 // pred_fallthru
      _
    %385 = vsyncpa [#allocation3], 1

</llo_original>
